<compile_context>
chip_gen: v7x
topology: tpu7x:2x2x1
jax: 0.10.0
libtpu: 0.0.40
codegen_flags: <defaults>
</compile_context>

<pallas_src>
from typing import Any, Callable, Dict, Union

import jax
import jax.numpy as jnp
from jax.experimental import pallas as pl
from jax.experimental.pallas import tpu as pltpu


# ----------------------------------------------------------------------------
# Pallas kernel: fused  out = relu(x @ W + b), tiled over (M, N, K).
# ----------------------------------------------------------------------------
def _linear_relu_kernel(x_ref, w_ref, b_ref, o_ref, acc_ref):
    k = pl.program_id(2)

    @pl.when(k == 0)
    def _():
        acc_ref[...] = jnp.zeros_like(acc_ref)

    # MXU matmul with f32 accumulation into the resident VMEM scratch.
    acc_ref[...] += jnp.dot(
        x_ref[...], w_ref[...], preferred_element_type=jnp.float32
    )

    # Epilogue only on the last K step: bias add + ReLU in f32, then cast.
    @pl.when(k == pl.num_programs(2) - 1)
    def _():
        out = acc_ref[...] + b_ref[...].astype(jnp.float32)  # (1, tn) broadcast
        o_ref[...] = jnp.maximum(out, 0.0).astype(o_ref.dtype)


def _round_up(x: int, m: int) -> int:
    return ((x + m - 1) // m) * m


def linear_relu_pallas(
    x: jax.Array,
    w: jax.Array,
    b: jax.Array,
    *,
    tm: int = 256,
    tn: int = 256,
    tk: int = 512,
    use_bf16_inputs: bool = False,
) -> jax.Array:
    """Fused relu(x @ w + b) on TPU via a tiled Pallas kernel.

    x: (M, K)   w: (K, N)   b: (1, N)   ->   (M, N) in x.dtype
    Inputs are zero-padded up to tile multiples; padding contributes zeros to
    the reduction and is sliced off the output.
    """
    M, K = x.shape
    K2, N = w.shape
    assert K == K2, f"shape mismatch: x {x.shape} vs w {w.shape}"
    assert b.shape == (1, N), f"bias must be (1, N), got {b.shape}"
    out_dtype = x.dtype

    # Shrink tiles for small problems (sublane=8 / lane=128 granularity), then
    # pad the problem up to exact tile multiples so the grid divides evenly.
    tm = min(tm, _round_up(M, 8))
    tk = min(tk, _round_up(K, 128))
    tn = min(tn, _round_up(N, 128))
    Mp, Kp, Np = _round_up(M, tm), _round_up(K, tk), _round_up(N, tn)

    if use_bf16_inputs:
        # v6e/v7x: bf16 MXU feed rate ~2x f32 and half the HBM bytes; f32
        # accumulation is preserved inside the kernel.
        x = x.astype(jnp.bfloat16)
        w = w.astype(jnp.bfloat16)
        b = b.astype(jnp.bfloat16)

    xp = jnp.pad(x, ((0, Mp - M), (0, Kp - K)))
    wp = jnp.pad(w, ((0, Kp - K), (0, Np - N)))
    bp = jnp.pad(b, ((0, 0), (0, Np - N)))

    grid = (Mp // tm, Np // tn, Kp // tk)

    out_padded = pl.pallas_call(
        _linear_relu_kernel,
        out_shape=jax.ShapeDtypeStruct((Mp, Np), out_dtype),
        grid=grid,
        in_specs=[
            pl.BlockSpec((tm, tk), lambda i, j, k: (i, k)),
            pl.BlockSpec((tk, tn), lambda i, j, k: (k, j)),
            pl.BlockSpec((1, tn), lambda i, j, k: (0, j)),
        ],
        out_specs=pl.BlockSpec((tm, tn), lambda i, j, k: (i, j)),
        scratch_shapes=[pltpu.VMEM((tm, tn), jnp.float32)],
        compiler_params=pltpu.CompilerParams(
            dimension_semantics=("parallel", "parallel", "arbitrary"),
        ),
    )(xp, wp, bp)

    if Mp == M and Np == N:
        return out_padded
    return out_padded[:M, :N]


# ----------------------------------------------------------------------------
# Synthetic wrapped module (the thing CompiledModuleWrapper wraps).
# ----------------------------------------------------------------------------
class LinearReluModule:
    """Tiny module whose forward hot-path runs in the Pallas kernel above."""

    def __init__(self, hidden_in: int, hidden_out: int, dtype=jnp.float32):
        key = jax.random.PRNGKey(0)
        kw, kb = jax.random.split(key)
        scale = 1.0 / jnp.sqrt(jnp.float32(hidden_in))
        self.weight = (
            jax.random.uniform(kw, (hidden_in, hidden_out), minval=-1.0, maxval=1.0)
            * scale
        ).astype(dtype)
        self.bias = (
            jax.random.uniform(kb, (1, hidden_out), minval=-1.0, maxval=1.0) * scale
        ).astype(dtype)

    def __call__(self, x: jax.Array) -> jax.Array:
        # NOTE: for the toy demo shape the kernel is pure overhead vs. an XLA
        # fusion; at real hidden sizes the tiled grid hits the MXU roofline.
        return linear_relu_pallas(x, self.weight, self.bias)


# ----------------------------------------------------------------------------
# CompiledModuleWrapper — faithful port of the DeepSpeed wrapper's semantics.
# ----------------------------------------------------------------------------
def is_compile_supported() -> bool:
    # JAX always supports jit-compilation.
    return True


def get_backend_fn(backend: Union[str, Callable]) -> Union[str, Callable]:
    if callable(backend):
        return backend
    if isinstance(backend, str):
        # In the JAX port, the only built-in "backend" strings map to jax.jit.
        # TODO(synk): dotted-path importable dynamo backends have no JAX
        # equivalent; use set_compiler_fn with a callable for that use-case.
        if backend in ("inductor", "jit", "jax.jit"):
            return backend
        raise ValueError(
            f"The backend {backend} is not in the list of available backends."
        )
    raise ValueError(f"backend for compile must be a string or Callable: {backend}")


class CompileConfig:
    def __init__(
        self,
        enabled: bool = False,
        backend: str = "inductor",
        kwargs: Union[Dict[str, Any], None] = None,
    ):
        if enabled and not is_compile_supported():
            raise ValueError("compile is not supported on this backend.")
        self.enabled = enabled
        self.backend = backend
        self.kwargs = dict(kwargs or {})


class CompiledModuleWrapper:
    def __init__(self, module, compile_config: Union[CompileConfig, None] = None):
        assert is_compile_supported(), "compile is not supported."
        compile_config = compile_config or CompileConfig()
        self.__dict__["wrapped"] = module
        self._is_compiled = False
        self._backend = get_backend_fn(compile_config.backend)
        self._compile_kwargs = dict(compile_config.kwargs)
        self._compiler_fn = None

    # attribute passthrough to the wrapped module (mirrors __getattr__ in torch)
    def __getattr__(self, name):
        return getattr(self.__dict__["wrapped"], name)

    def set_backend(self, backend: Union[str, Callable]):
        self._backend = get_backend_fn(backend)

    def set_torch_compile_kwargs(self, kwargs: Dict[str, Any]) -> None:
        if "backend" in kwargs:
            raise ValueError(
                "backend cannot be set as compile kwargs. Use set_backend instead."
            )
        self._compile_kwargs.update(kwargs)

    def set_compiler_fn(self, compiler_fn: Callable) -> None:
        self._compiler_fn = compiler_fn

    def _default_compile(self, module):
        # torch.compile analog: jax.jit around the module's __call__.
        return jax.jit(lambda *a, **kw: module(*a, **kw), **self._compile_kwargs)

    def forward(self, *args, **kwargs) -> Any:
        if not self.is_compiled:
            if self._compiler_fn is None:
                if callable(self._backend):
                    self.__dict__["wrapped"] = self._backend(self.__dict__["wrapped"])
                else:
                    self.__dict__["wrapped"] = self._default_compile(
                        self.__dict__["wrapped"]
                    )
            else:
                self.__dict__["wrapped"] = self._compiler_fn(self.__dict__["wrapped"])
            self._is_compiled = True
        return self.__dict__["wrapped"](*args, **kwargs)

    __call__ = forward

    @property
    def is_compiled(self) -> bool:
        return self._is_compiled

    @property
    def backend(self) -> Union[str, Callable]:
        return self._backend

    @property
    def torch_compile_kwargs(self) -> Dict[str, Any]:
        return self._compile_kwargs

    @property
    def compiler_fn(self) -> Union[Callable, None]:
        return self._compiler_fn


# ----------------------------------------------------------------------------
if __name__ == "__main__":
    # Small shapes (exercise the pad/slice path: K and N below 128).
    batch, hidden_in, hidden_out = 8, 32, 64

    key = jax.random.PRNGKey(0)
    x = jax.random.normal(key, (batch, hidden_in), dtype=jnp.float32)

    inner = LinearReluModule(hidden_in, hidden_out)
    wrapper = CompiledModuleWrapper(inner, CompileConfig(enabled=True))

    assert not wrapper.is_compiled
    out = wrapper(x)  # triggers lazy compilation, runs the Pallas kernel
    out = jax.block_until_ready(out)
    assert wrapper.is_compiled
    assert out.shape == (batch, hidden_out)

    # Correctness check against a plain-JAX reference.
    ref = jnp.maximum(x @ inner.weight + inner.bias, 0.0)
    assert jnp.allclose(out, ref, atol=1e-5, rtol=1e-5)

    # Second call reuses the compiled wrapped module (pass-through path).
    out2 = jax.block_until_ready(wrapper(x))
    assert jnp.allclose(out2, out)

    print("KERNEL_OK")
</pallas_src>

<mosaic_0001>
module attributes {stable_mosaic.version = 11 : i64} {
  func.func @_linear_relu_kernel(%arg0: i32, %arg1: i32, %arg2: i32, %arg3: memref<8x128xf32, #tpu.memory_space<vmem>>, %arg4: memref<128x128xf32, #tpu.memory_space<vmem>>, %arg5: memref<1x128xf32, #tpu.memory_space<vmem>>, %arg6: memref<8x128xf32, #tpu.memory_space<vmem>>, %arg7: memref<8x128xf32, #tpu.memory_space<vmem>>) attributes {dimension_semantics = [#tpu.dimension_semantics<parallel>, #tpu.dimension_semantics<parallel>, #tpu.dimension_semantics<arbitrary>], iteration_bounds = array<i64: 1, 1, 1>, scalar_prefetch = 0 : i64, scratch_operands = 1 : i64, tpu.core_type = #tpu.core_type<tc>, window_params = [{transform_indices = @transform_0, window_bounds = array<i64: 8, 128>}, {transform_indices = @transform_1, window_bounds = array<i64: 128, 128>}, {transform_indices = @transform_2, window_bounds = array<i64: 1, 128>}, {transform_indices = @transform_3, window_bounds = array<i64: 8, 128>}]} {
    %c0_i32 = arith.constant 0 : i32
    %0 = arith.cmpi eq, %arg2, %c0_i32 : i32
    %1 = arith.extui %0 : i1 to i32
    %c0_i32_0 = arith.constant 0 : i32
    %2 = arith.cmpi ne, %1, %c0_i32_0 : i32
    scf.if %2 {
      %cst_10 = arith.constant 0.000000e+00 : f32
      %12 = vector.broadcast %cst_10 : f32 to vector<8x128xf32>
      %c0_11 = arith.constant 0 : index
      %c0_12 = arith.constant 0 : index
      %13 = vector.load %arg7[%c0_11, %c0_12] : memref<8x128xf32, #tpu.memory_space<vmem>>, vector<8x128xf32>
      tpu.vector_store %arg7[%c0_11, %c0_12], %12 {strides = array<i32>} : memref<8x128xf32, #tpu.memory_space<vmem>>, vector<8x128xf32>,
    } else {
    }
    %c0 = arith.constant 0 : index
    %c0_1 = arith.constant 0 : index
    %3 = vector.load %arg7[%c0, %c0_1] : memref<8x128xf32, #tpu.memory_space<vmem>>, vector<8x128xf32>
    %c0_2 = arith.constant 0 : index
    %c0_3 = arith.constant 0 : index
    %4 = vector.load %arg3[%c0_2, %c0_3] : memref<8x128xf32, #tpu.memory_space<vmem>>, vector<8x128xf32>
    %c0_4 = arith.constant 0 : index
    %c0_5 = arith.constant 0 : index
    %5 = vector.load %arg4[%c0_4, %c0_5] : memref<128x128xf32, #tpu.memory_space<vmem>>, vector<128x128xf32>
    %cst = arith.constant dense<0.000000e+00> : vector<8x128xf32>
    %6 = tpu.matmul %4, %5, %cst {dimension_numbers = #tpu.dot_dimension_numbers<[1], [0], [0], [1], [0, 0, 1, 1], [], []>} : vector<8x128xf32>, vector<128x128xf32>, vector<8x128xf32> -> vector<8x128xf32>
    %7 = arith.addf %3, %6 : vector<8x128xf32>
    %c0_6 = arith.constant 0 : index
    %c0_7 = arith.constant 0 : index
    %8 = vector.load %arg7[%c0_6, %c0_7] : memref<8x128xf32, #tpu.memory_space<vmem>>, vector<8x128xf32>
    tpu.vector_store %arg7[%c0_6, %c0_7], %7 {strides = array<i32>} : memref<8x128xf32, #tpu.memory_space<vmem>>, vector<8x128xf32>,
    %c0_i32_8 = arith.constant 0 : i32
    %9 = arith.cmpi eq, %arg2, %c0_i32_8 : i32
    %10 = arith.extui %9 : i1 to i32
    %c0_i32_9 = arith.constant 0 : i32
    %11 = arith.cmpi ne, %10, %c0_i32_9 : i32
    scf.if %11 {
      %c0_10 = arith.constant 0 : index
      %c0_11 = arith.constant 0 : index
      %12 = vector.load %arg7[%c0_10, %c0_11] : memref<8x128xf32, #tpu.memory_space<vmem>>, vector<8x128xf32>
      %c0_12 = arith.constant 0 : index
      %c0_13 = arith.constant 0 : index
      %13 = vector.load %arg5[%c0_12, %c0_13] : memref<1x128xf32, #tpu.memory_space<vmem>>, vector<1x128xf32>
      %14 = vector.broadcast %13 : vector<1x128xf32> to vector<8x128xf32>
      %15 = arith.addf %12, %14 : vector<8x128xf32>
      %cst_14 = arith.constant 0.000000e+00 : f32
      %16 = vector.broadcast %cst_14 : f32 to vector<8x128xf32>
      %17 = arith.maximumf %15, %16 : vector<8x128xf32>
      %c0_15 = arith.constant 0 : index
      %c0_16 = arith.constant 0 : index
      %18 = vector.load %arg6[%c0_15, %c0_16] : memref<8x128xf32, #tpu.memory_space<vmem>>, vector<8x128xf32>
      tpu.vector_store %arg6[%c0_15, %c0_16], %17 {strides = array<i32>} : memref<8x128xf32, #tpu.memory_space<vmem>>, vector<8x128xf32>,
    } else {
    }
    return
  }
  func.func @transform_0(%arg0: i32, %arg1: i32, %arg2: i32) -> (i32, i32) {
    %c0_i32 = arith.constant 0 : i32
    return %arg0, %arg2 : i32, i32
  }
  func.func @transform_1(%arg0: i32, %arg1: i32, %arg2: i32) -> (i32, i32) {
    %c0_i32 = arith.constant 0 : i32
    return %arg2, %arg1 : i32, i32
  }
  func.func @transform_2(%arg0: i32, %arg1: i32, %arg2: i32) -> (i32, i32) {
    %c0_i32 = arith.constant 0 : i32
    %c0_i32_0 = arith.constant 0 : i32
    return %c0_i32, %arg1 : i32, i32
  }
  func.func @transform_3(%arg0: i32, %arg1: i32, %arg2: i32) -> (i32, i32) {
    %c0_i32 = arith.constant 0 : i32
    return %arg0, %arg1 : i32, i32
  }
}

</mosaic_0001>

<llo_original>
// kernel: _lambda_.1
$region0: #{_lambda_.1}
  #allocation0 [shape = 'u32[]', space=smem, size = 0x4, offset = 0x4, fixed_abs, tag = 'smem constant byte address 0x4 - core index']
  #allocation1 [shape = 'u32[144,128]{1,0:T(1,128)}', space=vmem, size = 0x12000, scoped, tag = 'internal scratch']
  #allocation2 [shape = 'f32[8,128]{1,0:T(8,128)}', space=vmem, size = 0x1000, scoped, tag = 'scratch operand']
  %s0 = inlined_call_operand.vmem [shape: f32[8,128], index: 0, kind: input, shape index: {}]
  %s1 = inlined_call_operand.hbm [shape: f32[128,128], index: 1, kind: input, shape index: {}]
  %s2 = inlined_call_operand.vmem [shape: f32[1,128], index: 2, kind: input, shape index: {}]
  %s3 = inlined_call_operand.hbm [shape: f32[8,128], index: 3, kind: output, shape index: {}]
  %s4 = sld [smem:[#allocation0]]
  $region34: #{_lambda_.1} parent=0
    _
  %s6 = ssub.s32 1, %s4
  %s7 = scalar_select 0, %s6, %s4
  $region1: #{_lambda_.1} parent=0
    #allocation3 [shape = 'u8[65536]{0}', space=vmem, size = 0x10000, scoped, tag = 'input window, operand 1, single buffered']
    #allocation4 [shape = 's32[1]{0}', space=sflag, size = 0x4, scoped, tag = 'scoped memory for _lambda_.1']
    #allocation5 [shape = 's32[1]{0}', space=sflag, size = 0x4, scoped, tag = 'scoped memory for _lambda_.1']
    #allocation6 [shape = 'u8[4096]{0}', space=vmem, size = 0x1000, scoped, tag = 'output window, operand 0, single buffered']
    %8 = vsyncpa [#allocation4], 0
    %9 = vsyncpa [#allocation5], 0
    // Predicated region
    $region2: #{_lambda_.1} parent=1 // pred_check
      _
    $region3: #{_lambda_.1} parent=1 // pred_check_branch
      %11 = sbr.rel (0) target = $region5
    $region4: #{_lambda_.1} parent=1 // pred_region
      _
    $region5: #{_lambda_.1} parent=1 // pred_fallthru
      _
    // Predicated region
    $region6: #{_lambda_.1} parent=1 // pred_check
      _
    $region7: #{_lambda_.1} parent=1 // pred_check_branch
      %13 = sbr.rel (0) target = $region9
    $region8: #{_lambda_.1} parent=1 // pred_region
      %s15 = ssub.s32 2048, 2048
      %16 = vsyncadd [#allocation4], %s15
      %s17 = sshll.u32 [#allocation3], 4
      %s18 = int_to_ptr.vmem [resolvable:$true] %s17
      %23 = dma.hbm_to_vmem [thread:$0]  %s1, 2048, %s18, [#allocation4], 128, 128, 8
    $region9: #{_lambda_.1} parent=1 // pred_fallthru
      _
    // Predicated region
    $region10: #{_lambda_.1} parent=1 // pred_check
      _
    $region11: #{_lambda_.1} parent=1 // pred_check_branch
      %25 = sbr.rel (0) target = $region13
    $region12: #{_lambda_.1} parent=1 // pred_region
      _
    $region13: #{_lambda_.1} parent=1 // pred_fallthru
      _
    // Predicated region
    $region14: #{_lambda_.1} parent=1 // pred_check
      _
    $region15: #{_lambda_.1} parent=1 // pred_check_branch
      %27 = sbr.rel (0) target = $region17
    $region16: #{_lambda_.1} parent=1 // pred_region
      %28 = dma.done [#allocation4], 2048
    $region17: #{_lambda_.1} parent=1 // pred_fallthru
      _
    %p29 = scmp.eq.s32.totalorder 0, 0
    // Predicated region
    $region18: #{_lambda_.1} parent=1 // pred_check
      %p30 = pneg %p29
    $region19: #{_lambda_.1} parent=1 // pred_check_branch
      %32 = sbr.rel (%p30) target = $region21
    $region20: #{_lambda_.1} parent=1 // pred_region
      %33 = vst [vmem:[#allocation2] sm:$0xff] 0.0
    $region21: #{_lambda_.1} parent=1 // pred_fallthru
      _
    %v34 = vld [vmem:[#allocation2] sm:$0xff]
    %v35 = vld [vmem:[%s0] sm:$0xff]
    %v36 = vld [vmem:[#allocation3] sm:$0xff]
    %v37 = vld [vmem:[#allocation3 + $0x8] sm:$0xff]
    %v38 = vld [vmem:[#allocation3 + $0x10] sm:$0xff]
    %v39 = vld [vmem:[#allocation3 + $0x18] sm:$0xff]
    %v40 = vld [vmem:[#allocation3 + $0x20] sm:$0xff]
    %v41 = vld [vmem:[#allocation3 + $0x28] sm:$0xff]
    %v42 = vld [vmem:[#allocation3 + $0x30] sm:$0xff]
    %v43 = vld [vmem:[#allocation3 + $0x38] sm:$0xff]
    %v44 = vld [vmem:[#allocation3 + $0x40] sm:$0xff]
    %v45 = vld [vmem:[#allocation3 + $0x48] sm:$0xff]
    %v46 = vld [vmem:[#allocation3 + $0x50] sm:$0xff]
    %v47 = vld [vmem:[#allocation3 + $0x58] sm:$0xff]
    %v48 = vld [vmem:[#allocation3 + $0x60] sm:$0xff]
    %v49 = vld [vmem:[#allocation3 + $0x68] sm:$0xff]
    %v50 = vld [vmem:[#allocation3 + $0x70] sm:$0xff]
    %v51 = vld [vmem:[#allocation3 + $0x78] sm:$0xff]
    %52 = vmatprep.subr.mxu0 0.0
    %53 = vmatpush1.msra.mxu0 %v36
    %54 = vmatprep.subr.mxu0 0.0
    %55 = vmatpush1.msra.mxu0 %v37
    %56 = vmatprep.subr.mxu0 0.0
    %57 = vmatpush1.msra.mxu0 %v38
    %58 = vmatprep.subr.mxu0 0.0
    %59 = vmatpush1.msra.mxu0 %v39
    %60 = vmatprep.subr.mxu0 0.0
    %61 = vmatpush1.msra.mxu0 %v40
    %62 = vmatprep.subr.mxu0 0.0
    %63 = vmatpush1.msra.mxu0 %v41
    %64 = vmatprep.subr.mxu0 0.0
    %65 = vmatpush1.msra.mxu0 %v42
    %66 = vmatprep.subr.mxu0 0.0
    %67 = vmatpush1.msra.mxu0 %v43
    %68 = vmatprep.subr.mxu0 0.0
    %69 = vmatpush1.msra.mxu0 %v44
    %70 = vmatprep.subr.mxu0 0.0
    %71 = vmatpush1.msra.mxu0 %v45
    %72 = vmatprep.subr.mxu0 0.0
    %73 = vmatpush1.msra.mxu0 %v46
    %74 = vmatprep.subr.mxu0 0.0
    %75 = vmatpush1.msra.mxu0 %v47
    %76 = vmatprep.subr.mxu0 0.0
    %77 = vmatpush1.msra.mxu0 %v48
    %78 = vmatprep.subr.mxu0 0.0
    %79 = vmatpush1.msra.mxu0 %v49
    %80 = vmatprep.subr.mxu0 0.0
    %81 = vmatpush1.msra.mxu0 %v50
    %82 = vmatprep.subr.mxu0 0.0
    %83 = vmatpush1.msra.mxu0 %v51
    %84 = vmatprep.subr.mxu0 0.0
    %85 = vmatpush1.msra.mxu0 0.0
    %86 = vmatprep.subr.mxu0 0.0
    %87 = vmatpush1.msra.mxu0 0.0
    %88 = vmatprep.subr.mxu0 0.0
    %89 = vmatpush1.msra.mxu0 0.0
    %90 = vmatprep.subr.mxu0 0.0
    %91 = vmatpush1.msra.mxu0 0.0
    %92 = vmatprep.subr.mxu0 0.0
    %93 = vmatpush1.msra.mxu0 0.0
    %94 = vmatprep.subr.mxu0 0.0
    %95 = vmatpush1.msra.mxu0 0.0
    %96 = vmatprep.subr.mxu0 0.0
    %97 = vmatpush1.msra.mxu0 0.0
    %98 = vmatprep.subr.mxu0 0.0
    %99 = vmatpush1.msra.mxu0 0.0
    %100 = vmatprep.subr.mxu0 0.0
    %101 = vmatpush1.msra.mxu0 0.0
    %102 = vmatprep.subr.mxu0 0.0
    %103 = vmatpush1.msra.mxu0 0.0
    %104 = vmatprep.subr.mxu0 0.0
    %105 = vmatpush1.msra.mxu0 0.0
    %106 = vmatprep.subr.mxu0 0.0
    %107 = vmatpush1.msra.mxu0 0.0
    %108 = vmatprep.subr.mxu0 0.0
    %109 = vmatpush1.msra.mxu0 0.0
    %110 = vmatprep.subr.mxu0 0.0
    %111 = vmatpush1.msra.mxu0 0.0
    %112 = vmatprep.subr.mxu0 0.0
    %113 = vmatpush1.msra.mxu0 0.0
    %114 = vmatprep.subr.mxu0 0.0
    %115 = vmatpush1.msra.mxu0 0.0
    %116 = vmatprep.mubr.f32.mxu0 0.0
    %117 = vmatmul.mubr.f32.gmra.mrb[0].mxu0 %v35
    %v118 = vpop.f32.mrb[0].mxu0
    %v119 = vadd.f32 0.0, %v118
    %v120 = vpop.f32.mrb[0].mxu0
    %121 = vdwg.mxu0
    %v122 = vadd.f32 %v34, %v119
    %123 = vst [vmem:[#allocation2] sm:$0xff] %v122
    // Predicated region
    $region22: #{_lambda_.1} parent=1 // pred_check
      %p124 = pneg %p29
    $region23: #{_lambda_.1} parent=1 // pred_check_branch
      %126 = sbr.rel (%p124) target = $region25
    $region24: #{_lambda_.1} parent=1 // pred_region
      %v127 = vld [vmem:[#allocation2] sm:$0xff]
      %v128 = vld [vmem:[%s2] sm:$0x1]
      %v130 = vlaneseq
      %v131 = vshrl.u32 %v130, 7
      %v132 = vsub.s32 0, %v131
      %v133 = vrot.slane %v128, %v132
      %v135 = vadd.f32 %v127, %v133
      %v136 = vmax.f32 %v135, 0.0
      %137 = vst [vmem:[#allocation6] sm:$0xff] %v136
    $region25: #{_lambda_.1} parent=1 // pred_fallthru
      _
    // Predicated region
    $region26: #{_lambda_.1} parent=1 // pred_check
      _
    $region27: #{_lambda_.1} parent=1 // pred_check_branch
      %139 = sbr.rel (0) target = $region29
    $region28: #{_lambda_.1} parent=1 // pred_region
      %s141 = ssub.s32 128, 128
      %142 = vsyncadd [#allocation5], %s141
      %s144 = sshll.u32 [#allocation6], 4
      %s145 = int_to_ptr.vmem [resolvable:$true] %s144
      %147 = dma.vmem_to_hbm [thread:$0]  %s145, 128, %s3, [#allocation5]
    $region29: #{_lambda_.1} parent=1 // pred_fallthru
      _
    // Predicated region
    $region30: #{_lambda_.1} parent=1 // pred_check
      _
    $region31: #{_lambda_.1} parent=1 // pred_check_branch
      %149 = sbr.rel (0) target = $region33
    $region32: #{_lambda_.1} parent=1 // pred_region
      %150 = dma.done [#allocation5], 128
    $region33: #{_lambda_.1} parent=1 // pred_fallthru
      _
    %151 = vsyncpa [#allocation4], 1
    %152 = vsyncpa [#allocation5], 1

</llo_original>
